<compile_context>
chip_gen: v6e
topology: v6e:2x2x1
jax: 0.10.0
libtpu: 0.0.40
codegen_flags: <defaults>
</compile_context>

<pallas_src>
import jax
import jax.numpy as jnp
import numpy as np
from jax.experimental import pallas as pl
from jax.experimental.pallas import tpu as pltpu

EPS = 1e-5
_LANE = 128
_VMEM_BUDGET = 40 * 2**20   # working-set budget for tile sizing (fits v7x 64 MiB)
_VMEM_LIMIT = 48 * 2**20    # explicit scoped-VMEM limit handed to Mosaic


def _round_up(x, n):
    return ((x + n - 1) // n) * n


def _choose_tm(m, k_rows, cout, bytes_per=4, budget=_VMEM_BUDGET):
    """Largest 128-multiple row tile whose double-buffered blocks fit VMEM."""
    kpad = _round_up(max(k_rows, 8), 8)
    cpad = _round_up(max(cout, 8), 8)
    m128 = _round_up(m, _LANE)
    tm = _LANE
    for cand in (2048, 1024, 512, 256, 128):
        need = 2 * (kpad + cpad) * cand * bytes_per   # 2x = double buffering
        if need <= budget:
            tm = cand
            break
    return min(tm, m128)


# ----------------------------- Pallas kernels -----------------------------

def _maxpool_kernel(x_ref, o_ref):
    # x_ref: (8, C, TM) -- 8 shifted views of the 2x2x2 window, lane-dense TM
    # o_ref: (C, TM)
    o_ref[...] = jnp.max(x_ref[...], axis=0)


def _conv_stats_kernel(w_ref, p_ref, y_ref, sum_ref, ssq_ref):
    # w_ref  : (Cout, K)       full weight matrix (resident)
    # p_ref  : (K, TM)         im2col patch tile (K = 27*Cin on sublanes)
    # y_ref  : (Cout, TM)      raw conv output tile (lane-dense store)
    # sum_ref, ssq_ref : (1, Cout, 1) resident per-chunk stat accumulators
    i = pl.program_id(1)
    acc = jnp.dot(w_ref[...], p_ref[...],
                  preferred_element_type=jnp.float32)          # (Cout, TM)
    y_ref[...] = acc.astype(y_ref.dtype)

    @pl.when(i == 0)
    def _init():
        sum_ref[...] = jnp.zeros_like(sum_ref)
        ssq_ref[...] = jnp.zeros_like(ssq_ref)

    sum_ref[...] += jnp.sum(acc, axis=1, keepdims=True)[None]
    ssq_ref[...] += jnp.sum(acc * acc, axis=1, keepdims=True)[None]


def _bn_relu_kernel(scale_ref, shift_ref, y_ref, o_ref):
    # scale/shift: (Cout, 1); y/o: (Cout, TM)
    o_ref[...] = jnp.maximum(
        y_ref[...] * scale_ref[...] + shift_ref[...], 0.0).astype(o_ref.dtype)


# ----------------------------- wrappers ------------------------------------

def maxpool3d_2_cm(x):
    """x: (N, C, D, H, W) -> pooled activation in CM layout (C, N*D2*H2*W2)."""
    n, c, d, h, w = x.shape
    assert d % 2 == 0 and h % 2 == 0 and w % 2 == 0, "MaxPool3d(2) needs even D/H/W"
    d2, h2, w2 = d // 2, h // 2, w // 2
    m = n * d2 * h2 * w2

    xt = jnp.transpose(x, (1, 0, 2, 3, 4))                     # (C, N, D, H, W)
    views = [xt[:, :, i::2, j::2, k::2].reshape(c, m)
             for i in range(2) for j in range(2) for k in range(2)]
    stacked = jnp.stack(views, axis=0)                         # (8, C, M)

    tm = _choose_tm(m, 8 * _round_up(c, 8), c)
    mp = _round_up(m, tm)
    stacked = jnp.pad(stacked, ((0, 0), (0, 0), (0, mp - m)))
    nt = mp // tm

    out = pl.pallas_call(
        _maxpool_kernel,
        out_shape=jax.ShapeDtypeStruct((c, mp), jnp.float32),
        grid_spec=pltpu.PrefetchScalarGridSpec(
            num_scalar_prefetch=0,
            grid=(nt,),
            in_specs=[pl.BlockSpec((8, c, tm), lambda i: (0, 0, i))],
            out_specs=pl.BlockSpec((c, tm), lambda i: (0, i)),
        ),
        compiler_params=pltpu.CompilerParams(
            dimension_semantics=("parallel",),
            vmem_limit_bytes=_VMEM_LIMIT),
    )(stacked)
    return out[:, :m], (d2, h2, w2)


def _im2col_T(x_cf):
    """(C, N, D, H, W) -> (27*C, N*D*H*W) patches for 3x3x3 conv, pad=1."""
    c, n, d, h, w = x_cf.shape
    xp = jnp.pad(x_cf, ((0, 0), (0, 0), (1, 1), (1, 1), (1, 1)))
    m = n * d * h * w
    taps = [xp[:, :, kd:kd + d, kh:kh + h, kw:kw + w].reshape(c, m)
            for kd in range(3) for kh in range(3) for kw in range(3)]
    return jnp.concatenate(taps, axis=0)                       # (27*C, M)


def conv_bn_relu(x_cf, w, gamma, beta):
    """x_cf: (Cin, N, D, H, W) -> (Cout, N, D, H, W).

    Conv3d(3x3x3, pad=1, no bias needed: it cancels under train-mode BN)
    + BatchNorm3d(training batch stats) + ReLU.
    """
    cin, n, d, h, wd = x_cf.shape
    cout = w.shape[0]
    m = n * d * h * wd
    k = 27 * cin

    patches = _im2col_T(x_cf)                                   # (K, M)
    w_mat = jnp.transpose(w, (0, 2, 3, 4, 1)).reshape(cout, k)  # (Cout, K)

    tm = _choose_tm(m, k, cout)
    mp = _round_up(m, tm)
    patches = jnp.pad(patches, ((0, 0), (0, mp - m)))           # zero cols -> 0 stats
    nt = mp // tm
    nc = 2 if (nt >= 2 and nt % 2 == 0) else 1                  # v7x dual-TC chunks
    tpc = nt // nc

    cost = pl.CostEstimate(flops=2 * m * k * cout, transcendentals=0,
                           bytes_accessed=4 * (k * mp + cout * mp + cout * k))

    y, psum, pssq = pl.pallas_call(
        _conv_stats_kernel,
        out_shape=(jax.ShapeDtypeStruct((cout, mp), jnp.float32),
                   jax.ShapeDtypeStruct((nc, cout, 1), jnp.float32),
                   jax.ShapeDtypeStruct((nc, cout, 1), jnp.float32)),
        grid_spec=pltpu.PrefetchScalarGridSpec(
            num_scalar_prefetch=0,
            grid=(nc, tpc),
            in_specs=[pl.BlockSpec((cout, k), lambda c, i: (0, 0)),
                      pl.BlockSpec((k, tm), lambda c, i: (0, c * tpc + i))],
            out_specs=[pl.BlockSpec((cout, tm), lambda c, i: (0, c * tpc + i)),
                       pl.BlockSpec((1, cout, 1), lambda c, i: (c, 0, 0)),
                       pl.BlockSpec((1, cout, 1), lambda c, i: (c, 0, 0))],
        ),
        compiler_params=pltpu.CompilerParams(
            dimension_semantics=("parallel", "arbitrary"),
            vmem_limit_bytes=_VMEM_LIMIT),
        cost_estimate=cost,
    )(w_mat, patches)

    # Finish training-mode batch statistics (global over all M voxels; biased var).
    total = jnp.sum(psum[:, :, 0], axis=0)                      # (Cout,)
    total_sq = jnp.sum(pssq[:, :, 0], axis=0)                   # (Cout,)
    mean = total / m
    var = total_sq / m - mean * mean
    scale = gamma * jax.lax.rsqrt(var + EPS)
    shift = beta - mean * scale

    out = pl.pallas_call(
        _bn_relu_kernel,
        out_shape=jax.ShapeDtypeStruct((cout, mp), jnp.float32),
        grid_spec=pltpu.PrefetchScalarGridSpec(
            num_scalar_prefetch=0,
            grid=(nt,),
            in_specs=[pl.BlockSpec((cout, 1), lambda i: (0, 0)),
                      pl.BlockSpec((cout, 1), lambda i: (0, 0)),
                      pl.BlockSpec((cout, tm), lambda i: (0, i))],
            out_specs=pl.BlockSpec((cout, tm), lambda i: (0, i)),
        ),
        compiler_params=pltpu.CompilerParams(
            dimension_semantics=("parallel",),
            vmem_limit_bytes=_VMEM_LIMIT),
    )(scale.reshape(cout, 1), shift.reshape(cout, 1), y)

    return out[:, :m].reshape(cout, n, d, h, wd)


@jax.jit
def down3d_forward(x_ncdhw, params):
    """Down3D forward. x: (N, C_in, D, H, W) -> (N, C_out, D/2, H/2, W/2)."""
    n, cin, d, h, w = x_ncdhw.shape
    pooled_cm, (d2, h2, w2) = maxpool3d_2_cm(x_ncdhw)
    pooled = pooled_cm.reshape(cin, n, d2, h2, w2)
    # conv biases b1/b2 are not inputs: they cancel exactly under train-mode BN.
    h1 = conv_bn_relu(pooled, params["w1"], params["g1"], params["be1"])
    h2 = conv_bn_relu(h1, params["w2"], params["g2"], params["be2"])
    return jnp.transpose(h2, (1, 0, 2, 3, 4))                   # (C,N,D,H,W)->NCDHW


# ----------------------------- pure-JAX reference --------------------------

def _ref_cbr(hh, w, b, g, be):
    y = jax.lax.conv_general_dilated(
        hh, w, window_strides=(1, 1, 1),
        padding=((1, 1), (1, 1), (1, 1)),
        dimension_numbers=("NCDHW", "OIDHW", "NCDHW"))
    y = y + b[None, :, None, None, None]
    mean = y.mean(axis=(0, 2, 3, 4), keepdims=True)
    var = ((y - mean) ** 2).mean(axis=(0, 2, 3, 4), keepdims=True)
    yn = (y - mean) * jax.lax.rsqrt(var + EPS)
    yn = yn * g[None, :, None, None, None] + be[None, :, None, None, None]
    return jnp.maximum(yn, 0.0)


def ref_forward(x, params):
    n, c, d, h, w = x.shape
    p = x.reshape(n, c, d // 2, 2, h // 2, 2, w // 2, 2).max(axis=(3, 5, 7))
    h1 = _ref_cbr(p, params["w1"], params["b1"], params["g1"], params["be1"])
    h2 = _ref_cbr(h1, params["w2"], params["b2"], params["g2"], params["be2"])
    return h2


# ----------------------------- main ----------------------------------------

if __name__ == "__main__":
    key = jax.random.PRNGKey(0)
    N, C_IN, C_OUT = 2, 4, 8
    D = H = W = 8

    k_x, k_w1, k_b1, k_w2, k_b2 = jax.random.split(key, 5)
    x = jax.random.normal(k_x, (N, C_IN, D, H, W), jnp.float32)

    # DoubleConv3D(in=4, out=8): mid_channels defaults to out_channels (=8).
    params = {
        "w1": 0.1 * jax.random.normal(k_w1, (C_OUT, C_IN, 3, 3, 3), jnp.float32),
        "b1": 0.1 * jax.random.normal(k_b1, (C_OUT,), jnp.float32),
        "g1": jnp.ones((C_OUT,), jnp.float32),    # BatchNorm3d default weight
        "be1": jnp.zeros((C_OUT,), jnp.float32),  # BatchNorm3d default bias
        "w2": 0.1 * jax.random.normal(k_w2, (C_OUT, C_OUT, 3, 3, 3), jnp.float32),
        "b2": 0.1 * jax.random.normal(k_b2, (C_OUT,), jnp.float32),
        "g2": jnp.ones((C_OUT,), jnp.float32),
        "be2": jnp.zeros((C_OUT,), jnp.float32),
    }

    out = jax.block_until_ready(down3d_forward(x, params))
    ref = jax.block_until_ready(ref_forward(x, params))

    assert out.shape == (N, C_OUT, D // 2, H // 2, W // 2), out.shape
    err = np.max(np.abs(np.asarray(out) - np.asarray(ref)))
    assert np.allclose(np.asarray(out), np.asarray(ref), rtol=1e-4, atol=2e-4), (
        f"mismatch vs reference: max abs err = {err}")

    print("KERNEL_OK")
</pallas_src>

<mosaic_0001>
module attributes {stable_mosaic.version = 11 : i64} {
  func.func @_maxpool_kernel(%arg0: i32, %arg1: memref<8x4x128xf32, #tpu.memory_space<vmem>>, %arg2: memref<4x128xf32, #tpu.memory_space<vmem>>) attributes {dimension_semantics = [#tpu.dimension_semantics<parallel>], iteration_bounds = array<i64: 1>, scalar_prefetch = 0 : i64, scratch_operands = 0 : i64, tpu.core_type = #tpu.core_type<tc>, window_params = [{transform_indices = @transform_0, window_bounds = array<i64: 8, 4, 128>}, {transform_indices = @transform_1, window_bounds = array<i64: 4, 128>}]} {
    %c0 = arith.constant 0 : index
    %c0_0 = arith.constant 0 : index
    %c0_1 = arith.constant 0 : index
    %0 = vector.load %arg1[%c0, %c0_0, %c0_1] : memref<8x4x128xf32, #tpu.memory_space<vmem>>, vector<8x4x128xf32>
    %cst = arith.constant dense<0xFF800000> : vector<4x128xf32>
    %1 = vector.multi_reduction <maximumf>, %0, %cst [0] : vector<8x4x128xf32> to vector<4x128xf32>
    %c0_2 = arith.constant 0 : index
    %c0_3 = arith.constant 0 : index
    %2 = vector.load %arg2[%c0_2, %c0_3] : memref<4x128xf32, #tpu.memory_space<vmem>>, vector<4x128xf32>
    tpu.vector_store %arg2[%c0_2, %c0_3], %1 {strides = array<i32>} : memref<4x128xf32, #tpu.memory_space<vmem>>, vector<4x128xf32>,
    return
  }
  func.func @transform_0(%arg0: i32) -> (i32, i32, i32) {
    %c0_i32 = arith.constant 0 : i32
    %c0_i32_0 = arith.constant 0 : i32
    %c0_i32_1 = arith.constant 0 : i32
    return %c0_i32, %c0_i32_0, %arg0 : i32, i32, i32
  }
  func.func @transform_1(%arg0: i32) -> (i32, i32) {
    %c0_i32 = arith.constant 0 : i32
    %c0_i32_0 = arith.constant 0 : i32
    return %c0_i32, %arg0 : i32, i32
  }
}

module attributes {stable_mosaic.version = 11 : i64} {
  func.func @_conv_stats_kernel(%arg0: i32, %arg1: i32, %arg2: memref<8x108xf32, #tpu.memory_space<vmem>>, %arg3: memref<108x128xf32, #tpu.memory_space<vmem>>, %arg4: memref<8x128xf32, #tpu.memory_space<vmem>>, %arg5: memref<1x8x1xf32, #tpu.memory_space<vmem>>, %arg6: memref<1x8x1xf32, #tpu.memory_space<vmem>>) attributes {dimension_semantics = [#tpu.dimension_semantics<parallel>, #tpu.dimension_semantics<arbitrary>], iteration_bounds = array<i64: 1, 1>, scalar_prefetch = 0 : i64, scratch_operands = 0 : i64, tpu.core_type = #tpu.core_type<tc>, window_params = [{pipeline_mode = #tpu.pipeline_mode<synchronous>, transform_indices = @transform_0, window_bounds = array<i64: 8, 108>}, {transform_indices = @transform_1, window_bounds = array<i64: 108, 128>}, {transform_indices = @transform_2, window_bounds = array<i64: 8, 128>}, {transform_indices = @transform_3, window_bounds = array<i64: 1, 8, 1>}, {transform_indices = @transform_4, window_bounds = array<i64: 1, 8, 1>}]} {
    %c0 = arith.constant 0 : index
    %c0_0 = arith.constant 0 : index
    %0 = vector.load %arg2[%c0, %c0_0] : memref<8x108xf32, #tpu.memory_space<vmem>>, vector<8x108xf32>
    %c0_1 = arith.constant 0 : index
    %c0_2 = arith.constant 0 : index
    %1 = vector.load %arg3[%c0_1, %c0_2] : memref<108x128xf32, #tpu.memory_space<vmem>>, vector<108x128xf32>
    %cst = arith.constant dense<0.000000e+00> : vector<8x128xf32>
    %2 = tpu.matmul %0, %1, %cst {dimension_numbers = #tpu.dot_dimension_numbers<[1], [0], [0], [1], [0, 0, 1, 1], [], []>} : vector<8x108xf32>, vector<108x128xf32>, vector<8x128xf32> -> vector<8x128xf32>
    %c0_3 = arith.constant 0 : index
    %c0_4 = arith.constant 0 : index
    %3 = vector.load %arg4[%c0_3, %c0_4] : memref<8x128xf32, #tpu.memory_space<vmem>>, vector<8x128xf32>
    tpu.vector_store %arg4[%c0_3, %c0_4], %2 {strides = array<i32>} : memref<8x128xf32, #tpu.memory_space<vmem>>, vector<8x128xf32>,
    %c0_i32 = arith.constant 0 : i32
    %4 = arith.cmpi eq, %arg1, %c0_i32 : i32
    %5 = arith.extui %4 : i1 to i32
    %c0_i32_5 = arith.constant 0 : i32
    %6 = arith.cmpi ne, %5, %c0_i32_5 : i32
    scf.if %6 {
      %cst_20 = arith.constant 0.000000e+00 : f32
      %20 = vector.broadcast %cst_20 : f32 to vector<1x8x1xf32>
      %c0_21 = arith.constant 0 : index
      %c0_22 = arith.constant 0 : index
      %c0_23 = arith.constant 0 : index
      %21 = vector.load %arg5[%c0_21, %c0_22, %c0_23] : memref<1x8x1xf32, #tpu.memory_space<vmem>>, vector<1x8x1xf32>
      tpu.vector_store %arg5[%c0_21, %c0_22, %c0_23], %20 {strides = array<i32>} : memref<1x8x1xf32, #tpu.memory_space<vmem>>, vector<1x8x1xf32>,
      %cst_24 = arith.constant 0.000000e+00 : f32
      %22 = vector.broadcast %cst_24 : f32 to vector<1x8x1xf32>
      %c0_25 = arith.constant 0 : index
      %c0_26 = arith.constant 0 : index
      %c0_27 = arith.constant 0 : index
      %23 = vector.load %arg6[%c0_25, %c0_26, %c0_27] : memref<1x8x1xf32, #tpu.memory_space<vmem>>, vector<1x8x1xf32>
      tpu.vector_store %arg6[%c0_25, %c0_26, %c0_27], %22 {strides = array<i32>} : memref<1x8x1xf32, #tpu.memory_space<vmem>>, vector<1x8x1xf32>,
    } else {
    }
    %c0_6 = arith.constant 0 : index
    %c0_7 = arith.constant 0 : index
    %c0_8 = arith.constant 0 : index
    %7 = vector.load %arg5[%c0_6, %c0_7, %c0_8] : memref<1x8x1xf32, #tpu.memory_space<vmem>>, vector<1x8x1xf32>
    %cst_9 = arith.constant dense<0.000000e+00> : vector<8xf32>
    %8 = vector.multi_reduction <add>, %2, %cst_9 [1] : vector<8x128xf32> to vector<8xf32>
    %9 = vector.shape_cast %8 : vector<8xf32> to vector<8x1xf32>
    %10 = vector.shape_cast %9 : vector<8x1xf32> to vector<1x8x1xf32>
    %11 = arith.addf %7, %10 : vector<1x8x1xf32>
    %c0_10 = arith.constant 0 : index
    %c0_11 = arith.constant 0 : index
    %c0_12 = arith.constant 0 : index
    %12 = vector.load %arg5[%c0_10, %c0_11, %c0_12] : memref<1x8x1xf32, #tpu.memory_space<vmem>>, vector<1x8x1xf32>
    tpu.vector_store %arg5[%c0_10, %c0_11, %c0_12], %11 {strides = array<i32>} : memref<1x8x1xf32, #tpu.memory_space<vmem>>, vector<1x8x1xf32>,
    %c0_13 = arith.constant 0 : index
    %c0_14 = arith.constant 0 : index
    %c0_15 = arith.constant 0 : index
    %13 = vector.load %arg6[%c0_13, %c0_14, %c0_15] : memref<1x8x1xf32, #tpu.memory_space<vmem>>, vector<1x8x1xf32>
    %14 = arith.mulf %2, %2 : vector<8x128xf32>
    %cst_16 = arith.constant dense<0.000000e+00> : vector<8xf32>
    %15 = vector.multi_reduction <add>, %14, %cst_16 [1] : vector<8x128xf32> to vector<8xf32>
    %16 = vector.shape_cast %15 : vector<8xf32> to vector<8x1xf32>
    %17 = vector.shape_cast %16 : vector<8x1xf32> to vector<1x8x1xf32>
    %18 = arith.addf %13, %17 : vector<1x8x1xf32>
    %c0_17 = arith.constant 0 : index
    %c0_18 = arith.constant 0 : index
    %c0_19 = arith.constant 0 : index
    %19 = vector.load %arg6[%c0_17, %c0_18, %c0_19] : memref<1x8x1xf32, #tpu.memory_space<vmem>>, vector<1x8x1xf32>
    tpu.vector_store %arg6[%c0_17, %c0_18, %c0_19], %18 {strides = array<i32>} : memref<1x8x1xf32, #tpu.memory_space<vmem>>, vector<1x8x1xf32>,
    return
  }
  func.func @transform_0(%arg0: i32, %arg1: i32) -> (i32, i32) {
    %c0_i32 = arith.constant 0 : i32
    %c0_i32_0 = arith.constant 0 : i32
    %c0_i32_1 = arith.constant 0 : i32
    return %c0_i32, %c0_i32_0 : i32, i32
  }
  func.func @transform_1(%arg0: i32, %arg1: i32) -> (i32, i32) {
    %c1_i32 = arith.constant 1 : i32
    %0 = arith.muli %arg0, %c1_i32 : i32
    %1 = arith.addi %0, %arg1 : i32
    %c0_i32 = arith.constant 0 : i32
    %c0_i32_0 = arith.constant 0 : i32
    return %c0_i32, %1 : i32, i32
  }
  func.func @transform_2(%arg0: i32, %arg1: i32) -> (i32, i32) {
    %c1_i32 = arith.constant 1 : i32
    %0 = arith.muli %arg0, %c1_i32 : i32
    %1 = arith.addi %0, %arg1 : i32
    %c0_i32 = arith.constant 0 : i32
    %c0_i32_0 = arith.constant 0 : i32
    return %c0_i32, %1 : i32, i32
  }
  func.func @transform_3(%arg0: i32, %arg1: i32) -> (i32, i32, i32) {
    %c0_i32 = arith.constant 0 : i32
    %c0_i32_0 = arith.constant 0 : i32
    %c0_i32_1 = arith.constant 0 : i32
    return %arg0, %c0_i32, %c0_i32_0 : i32, i32, i32
  }
  func.func @transform_4(%arg0: i32, %arg1: i32) -> (i32, i32, i32) {
    %c0_i32 = arith.constant 0 : i32
    %c0_i32_0 = arith.constant 0 : i32
    %c0_i32_1 = arith.constant 0 : i32
    return %arg0, %c0_i32, %c0_i32_0 : i32, i32, i32
  }
}

module attributes {stable_mosaic.version = 11 : i64} {
  func.func @_bn_relu_kernel(%arg0: i32, %arg1: memref<8x1xf32, #tpu.memory_space<vmem>>, %arg2: memref<8x1xf32, #tpu.memory_space<vmem>>, %arg3: memref<8x128xf32, #tpu.memory_space<vmem>>, %arg4: memref<8x128xf32, #tpu.memory_space<vmem>>) attributes {dimension_semantics = [#tpu.dimension_semantics<parallel>], iteration_bounds = array<i64: 1>, scalar_prefetch = 0 : i64, scratch_operands = 0 : i64, tpu.core_type = #tpu.core_type<tc>, window_params = [{pipeline_mode = #tpu.pipeline_mode<synchronous>, transform_indices = @transform_0, window_bounds = array<i64: 8, 1>}, {pipeline_mode = #tpu.pipeline_mode<synchronous>, transform_indices = @transform_1, window_bounds = array<i64: 8, 1>}, {transform_indices = @transform_2, window_bounds = array<i64: 8, 128>}, {transform_indices = @transform_3, window_bounds = array<i64: 8, 128>}]} {
    %c0 = arith.constant 0 : index
    %c0_0 = arith.constant 0 : index
    %0 = vector.load %arg3[%c0, %c0_0] : memref<8x128xf32, #tpu.memory_space<vmem>>, vector<8x128xf32>
    %c0_1 = arith.constant 0 : index
    %c0_2 = arith.constant 0 : index
    %1 = vector.load %arg1[%c0_1, %c0_2] : memref<8x1xf32, #tpu.memory_space<vmem>>, vector<8x1xf32>
    %2 = vector.broadcast %1 : vector<8x1xf32> to vector<8x128xf32>
    %3 = arith.mulf %0, %2 : vector<8x128xf32>
    %c0_3 = arith.constant 0 : index
    %c0_4 = arith.constant 0 : index
    %4 = vector.load %arg2[%c0_3, %c0_4] : memref<8x1xf32, #tpu.memory_space<vmem>>, vector<8x1xf32>
    %5 = vector.broadcast %4 : vector<8x1xf32> to vector<8x128xf32>
    %6 = arith.addf %3, %5 : vector<8x128xf32>
    %cst = arith.constant 0.000000e+00 : f32
    %7 = vector.broadcast %cst : f32 to vector<8x128xf32>
    %8 = arith.maximumf %6, %7 : vector<8x128xf32>
    %c0_5 = arith.constant 0 : index
    %c0_6 = arith.constant 0 : index
    %9 = vector.load %arg4[%c0_5, %c0_6] : memref<8x128xf32, #tpu.memory_space<vmem>>, vector<8x128xf32>
    tpu.vector_store %arg4[%c0_5, %c0_6], %8 {strides = array<i32>} : memref<8x128xf32, #tpu.memory_space<vmem>>, vector<8x128xf32>,
    return
  }
  func.func @transform_0(%arg0: i32) -> (i32, i32) {
    %c0_i32 = arith.constant 0 : i32
    %c0_i32_0 = arith.constant 0 : i32
    %c0_i32_1 = arith.constant 0 : i32
    return %c0_i32, %c0_i32_0 : i32, i32
  }
  func.func @transform_1(%arg0: i32) -> (i32, i32) {
    %c0_i32 = arith.constant 0 : i32
    %c0_i32_0 = arith.constant 0 : i32
    %c0_i32_1 = arith.constant 0 : i32
    return %c0_i32, %c0_i32_0 : i32, i32
  }
  func.func @transform_2(%arg0: i32) -> (i32, i32) {
    %c0_i32 = arith.constant 0 : i32
    %c0_i32_0 = arith.constant 0 : i32
    return %c0_i32, %arg0 : i32, i32
  }
  func.func @transform_3(%arg0: i32) -> (i32, i32) {
    %c0_i32 = arith.constant 0 : i32
    %c0_i32_0 = arith.constant 0 : i32
    return %c0_i32, %arg0 : i32, i32
  }
}

module attributes {stable_mosaic.version = 11 : i64} {
  func.func @_conv_stats_kernel(%arg0: i32, %arg1: i32, %arg2: memref<8x216xf32, #tpu.memory_space<vmem>>, %arg3: memref<216x128xf32, #tpu.memory_space<vmem>>, %arg4: memref<8x128xf32, #tpu.memory_space<vmem>>, %arg5: memref<1x8x1xf32, #tpu.memory_space<vmem>>, %arg6: memref<1x8x1xf32, #tpu.memory_space<vmem>>) attributes {dimension_semantics = [#tpu.dimension_semantics<parallel>, #tpu.dimension_semantics<arbitrary>], iteration_bounds = array<i64: 1, 1>, scalar_prefetch = 0 : i64, scratch_operands = 0 : i64, tpu.core_type = #tpu.core_type<tc>, window_params = [{pipeline_mode = #tpu.pipeline_mode<synchronous>, transform_indices = @transform_0, window_bounds = array<i64: 8, 216>}, {transform_indices = @transform_1, window_bounds = array<i64: 216, 128>}, {transform_indices = @transform_2, window_bounds = array<i64: 8, 128>}, {transform_indices = @transform_3, window_bounds = array<i64: 1, 8, 1>}, {transform_indices = @transform_4, window_bounds = array<i64: 1, 8, 1>}]} {
    %c0 = arith.constant 0 : index
    %c0_0 = arith.constant 0 : index
    %0 = vector.load %arg2[%c0, %c0_0] : memref<8x216xf32, #tpu.memory_space<vmem>>, vector<8x216xf32>
    %c0_1 = arith.constant 0 : index
    %c0_2 = arith.constant 0 : index
    %1 = vector.load %arg3[%c0_1, %c0_2] : memref<216x128xf32, #tpu.memory_space<vmem>>, vector<216x128xf32>
    %cst = arith.constant dense<0.000000e+00> : vector<8x128xf32>
    %2 = tpu.matmul %0, %1, %cst {dimension_numbers = #tpu.dot_dimension_numbers<[1], [0], [0], [1], [0, 0, 1, 1], [], []>} : vector<8x216xf32>, vector<216x128xf32>, vector<8x128xf32> -> vector<8x128xf32>
    %c0_3 = arith.constant 0 : index
    %c0_4 = arith.constant 0 : index
    %3 = vector.load %arg4[%c0_3, %c0_4] : memref<8x128xf32, #tpu.memory_space<vmem>>, vector<8x128xf32>
    tpu.vector_store %arg4[%c0_3, %c0_4], %2 {strides = array<i32>} : memref<8x128xf32, #tpu.memory_space<vmem>>, vector<8x128xf32>,
    %c0_i32 = arith.constant 0 : i32
    %4 = arith.cmpi eq, %arg1, %c0_i32 : i32
    %5 = arith.extui %4 : i1 to i32
    %c0_i32_5 = arith.constant 0 : i32
    %6 = arith.cmpi ne, %5, %c0_i32_5 : i32
    scf.if %6 {
      %cst_20 = arith.constant 0.000000e+00 : f32
      %20 = vector.broadcast %cst_20 : f32 to vector<1x8x1xf32>
      %c0_21 = arith.constant 0 : index
      %c0_22 = arith.constant 0 : index
      %c0_23 = arith.constant 0 : index
      %21 = vector.load %arg5[%c0_21, %c0_22, %c0_23] : memref<1x8x1xf32, #tpu.memory_space<vmem>>, vector<1x8x1xf32>
      tpu.vector_store %arg5[%c0_21, %c0_22, %c0_23], %20 {strides = array<i32>} : memref<1x8x1xf32, #tpu.memory_space<vmem>>, vector<1x8x1xf32>,
      %cst_24 = arith.constant 0.000000e+00 : f32
      %22 = vector.broadcast %cst_24 : f32 to vector<1x8x1xf32>
      %c0_25 = arith.constant 0 : index
      %c0_26 = arith.constant 0 : index
      %c0_27 = arith.constant 0 : index
      %23 = vector.load %arg6[%c0_25, %c0_26, %c0_27] : memref<1x8x1xf32, #tpu.memory_space<vmem>>, vector<1x8x1xf32>
      tpu.vector_store %arg6[%c0_25, %c0_26, %c0_27], %22 {strides = array<i32>} : memref<1x8x1xf32, #tpu.memory_space<vmem>>, vector<1x8x1xf32>,
    } else {
    }
    %c0_6 = arith.constant 0 : index
    %c0_7 = arith.constant 0 : index
    %c0_8 = arith.constant 0 : index
    %7 = vector.load %arg5[%c0_6, %c0_7, %c0_8] : memref<1x8x1xf32, #tpu.memory_space<vmem>>, vector<1x8x1xf32>
    %cst_9 = arith.constant dense<0.000000e+00> : vector<8xf32>
    %8 = vector.multi_reduction <add>, %2, %cst_9 [1] : vector<8x128xf32> to vector<8xf32>
    %9 = vector.shape_cast %8 : vector<8xf32> to vector<8x1xf32>
    %10 = vector.shape_cast %9 : vector<8x1xf32> to vector<1x8x1xf32>
    %11 = arith.addf %7, %10 : vector<1x8x1xf32>
    %c0_10 = arith.constant 0 : index
    %c0_11 = arith.constant 0 : index
    %c0_12 = arith.constant 0 : index
    %12 = vector.load %arg5[%c0_10, %c0_11, %c0_12] : memref<1x8x1xf32, #tpu.memory_space<vmem>>, vector<1x8x1xf32>
    tpu.vector_store %arg5[%c0_10, %c0_11, %c0_12], %11 {strides = array<i32>} : memref<1x8x1xf32, #tpu.memory_space<vmem>>, vector<1x8x1xf32>,
    %c0_13 = arith.constant 0 : index
    %c0_14 = arith.constant 0 : index
    %c0_15 = arith.constant 0 : index
    %13 = vector.load %arg6[%c0_13, %c0_14, %c0_15] : memref<1x8x1xf32, #tpu.memory_space<vmem>>, vector<1x8x1xf32>
    %14 = arith.mulf %2, %2 : vector<8x128xf32>
    %cst_16 = arith.constant dense<0.000000e+00> : vector<8xf32>
    %15 = vector.multi_reduction <add>, %14, %cst_16 [1] : vector<8x128xf32> to vector<8xf32>
    %16 = vector.shape_cast %15 : vector<8xf32> to vector<8x1xf32>
    %17 = vector.shape_cast %16 : vector<8x1xf32> to vector<1x8x1xf32>
    %18 = arith.addf %13, %17 : vector<1x8x1xf32>
    %c0_17 = arith.constant 0 : index
    %c0_18 = arith.constant 0 : index
    %c0_19 = arith.constant 0 : index
    %19 = vector.load %arg6[%c0_17, %c0_18, %c0_19] : memref<1x8x1xf32, #tpu.memory_space<vmem>>, vector<1x8x1xf32>
    tpu.vector_store %arg6[%c0_17, %c0_18, %c0_19], %18 {strides = array<i32>} : memref<1x8x1xf32, #tpu.memory_space<vmem>>, vector<1x8x1xf32>,
    return
  }
  func.func @transform_0(%arg0: i32, %arg1: i32) -> (i32, i32) {
    %c0_i32 = arith.constant 0 : i32
    %c0_i32_0 = arith.constant 0 : i32
    %c0_i32_1 = arith.constant 0 : i32
    return %c0_i32, %c0_i32_0 : i32, i32
  }
  func.func @transform_1(%arg0: i32, %arg1: i32) -> (i32, i32) {
    %c1_i32 = arith.constant 1 : i32
    %0 = arith.muli %arg0, %c1_i32 : i32
    %1 = arith.addi %0, %arg1 : i32
    %c0_i32 = arith.constant 0 : i32
    %c0_i32_0 = arith.constant 0 : i32
    return %c0_i32, %1 : i32, i32
  }
  func.func @transform_2(%arg0: i32, %arg1: i32) -> (i32, i32) {
    %c1_i32 = arith.constant 1 : i32
    %0 = arith.muli %arg0, %c1_i32 : i32
    %1 = arith.addi %0, %arg1 : i32
    %c0_i32 = arith.constant 0 : i32
    %c0_i32_0 = arith.constant 0 : i32
    return %c0_i32, %1 : i32, i32
  }
  func.func @transform_3(%arg0: i32, %arg1: i32) -> (i32, i32, i32) {
    %c0_i32 = arith.constant 0 : i32
    %c0_i32_0 = arith.constant 0 : i32
    %c0_i32_1 = arith.constant 0 : i32
    return %arg0, %c0_i32, %c0_i32_0 : i32, i32, i32
  }
  func.func @transform_4(%arg0: i32, %arg1: i32) -> (i32, i32, i32) {
    %c0_i32 = arith.constant 0 : i32
    %c0_i32_0 = arith.constant 0 : i32
    %c0_i32_1 = arith.constant 0 : i32
    return %arg0, %c0_i32, %c0_i32_0 : i32, i32, i32
  }
}

</mosaic_0001>

<llo_original>
// kernel: down3d_forward.5
$region0: #{down3d_forward.5}
  #allocation0 [shape = 'u32[]', space=smem, size = 0x4, offset = 0x4, fixed_abs, tag = 'smem constant byte address 0x4 - core index']
  #allocation1 [shape = 'u32[144,128]{1,0:T(1,128)}', space=vmem, size = 0x12000, scoped, tag = 'internal scratch']
  %s0 = inlined_call_operand.vmem [shape: f32[8,4,128], index: 0, kind: input, shape index: {}]
  %s1 = inlined_call_operand.vmem [shape: f32[4,128], index: 1, kind: output, shape index: {}]
  %s2 = sld [smem:[#allocation0]]
  $region14: #{down3d_forward.5} parent=0
    _
  %s4 = ssub.s32 1, %s2
  %s5 = scalar_select 0, %s4, %s2
  // Predicated region
  $region2: #{down3d_forward.5} parent=0 // pred_check
    _
  $region3: #{down3d_forward.5} parent=0 // pred_check_branch
    %7 = sbr.rel (0) target = $region5
  $region4: #{down3d_forward.5} parent=0 // pred_region
    _
  $region5: #{down3d_forward.5} parent=0 // pred_fallthru
    _
  %v8 = vld [vmem:[%s0] sm:$0xf]
  %v9 = vld [vmem:[%s0 + $0x4] sm:$0xf]
  %v10 = vld [vmem:[%s0 + $0x8] sm:$0xf]
  %v11 = vld [vmem:[%s0 + $0xc] sm:$0xf]
  %v12 = vld [vmem:[%s0 + $0x10] sm:$0xf]
  %v13 = vld [vmem:[%s0 + $0x14] sm:$0xf]
  %v14 = vld [vmem:[%s0 + $0x18] sm:$0xf]
  %v15 = vld [vmem:[%s0 + $0x1c] sm:$0xf]
  %vm16 = vcmask 1043456
  %v17 = vsel %vm16, %v8, -inf
  %v18 = vsel %vm16, %v9, -inf
  %v19 = vsel %vm16, %v10, -inf
  %v20 = vsel %vm16, %v11, -inf
  %v21 = vsel %vm16, %v12, -inf
  %v22 = vmax.f32 %v17, %v21
  %v23 = vsel %vm16, %v13, -inf
  %v24 = vmax.f32 %v18, %v23
  %v25 = vsel %vm16, %v14, -inf
  %v26 = vmax.f32 %v19, %v25
  %v27 = vsel %vm16, %v15, -inf
  %v28 = vmax.f32 %v20, %v27
  %v29 = vmax.f32 %v22, %v24
  %v30 = vmax.f32 %v26, %v28
  %v31 = vmax.f32 %v29, %v30
  %32 = vst [vmem:[%s1] sm:$0xf] %v31
  // Predicated region
  $region6: #{down3d_forward.5} parent=0 // pred_check
    _
  $region7: #{down3d_forward.5} parent=0 // pred_check_branch
    %34 = sbr.rel (0) target = $region9
  $region8: #{down3d_forward.5} parent=0 // pred_region
    _
  $region9: #{down3d_forward.5} parent=0 // pred_fallthru
    _
  // Predicated region
  $region10: #{down3d_forward.5} parent=0 // pred_check
    _
  $region11: #{down3d_forward.5} parent=0 // pred_check_branch
    %36 = sbr.rel (0) target = $region13
  $region12: #{down3d_forward.5} parent=0 // pred_region
    _
  $region13: #{down3d_forward.5} parent=0 // pred_fallthru
    _

// kernel: down3d_forward.6
$region0: #{down3d_forward.6}
  #allocation0 [shape = 'u32[]', space=smem, size = 0x4, offset = 0x4, fixed_abs, tag = 'smem constant byte address 0x4 - core index']
  #allocation1 [shape = 'u32[144,128]{1,0:T(1,128)}', space=vmem, size = 0x12000, scoped, tag = 'internal scratch']
  %s0 = inlined_call_operand.vmem [shape: f32[8,108], index: 0, kind: input, shape index: {}]
  %s1 = inlined_call_operand.vmem [shape: f32[108,128], index: 1, kind: input, shape index: {}]
  %s2 = inlined_call_operand.vmem [shape: f32[8,128], index: 2, kind: output, shape index: {0}]
  %s3 = inlined_call_operand.vmem [shape: f32[1,8,1], index: 3, kind: output, shape index: {1}]
  %s4 = inlined_call_operand.vmem [shape: f32[1,8,1], index: 4, kind: output, shape index: {2}]
  %5 = xla_tuple %s2, %s3, %s4
  %s6 = sld [smem:[#allocation0]]
  $region38: #{down3d_forward.6} parent=0
    _
  %s8 = ssub.s32 1, %s6
  %s9 = scalar_select 0, %s8, %s6
  // Predicated region
  $region2: #{down3d_forward.6} parent=0 // pred_check
    _
  $region3: #{down3d_forward.6} parent=0 // pred_check_branch
    %11 = sbr.rel (0) target = $region5
  $region4: #{down3d_forward.6} parent=0 // pred_region
    _
  $region5: #{down3d_forward.6} parent=0 // pred_fallthru
    _
  // Predicated region
  $region6: #{down3d_forward.6} parent=0 // pred_check
    _
  $region7: #{down3d_forward.6} parent=0 // pred_check_branch
    %13 = sbr.rel (0) target = $region9
  $region8: #{down3d_forward.6} parent=0 // pred_region
    %s14 = sadd.s32 0, 0
    %p15 = scmp.lt.s32.totalorder %s14, 0
    %s16 = scalar_select %p15, %s14, 0
    %s17 = smul.addr %s16, 8
    %s18 = scalar_lea.vmem %s1, %s17
    %s19 = sadd.s32 0, 0
  $region9: #{down3d_forward.6} parent=0 // pred_fallthru
    _
  %s20 = sadd.s32 0, 0
  %p21 = scmp.lt.s32.totalorder %s20, 0
  %s22 = scalar_select %p21, %s20, 0
  %s23 = smul.addr %s22, 8
  %s24 = scalar_lea.vmem %s1, %s23
  %s25 = sadd.s32 0, 0
  %p26 = scmp.lt.s32.totalorder %s25, 0
  %s27 = scalar_select %p26, %s25, 0
  %s28 = smul.addr %s27, 8
  %s29 = scalar_lea.vmem %s2, %s28
  %s30 = sadd.s32 0, 0
  %p31 = scmp.lt.s32.totalorder %s30, 0
  %s32 = scalar_select %p31, %s30, 0
  %s33 = smul.addr %s32, 8
  %s34 = scalar_lea.vmem %s1, %s33
  %s35 = sadd.s32 0, 0
  %s36 = sadd.s32 0, 0
  %p37 = scmp.lt.s32.totalorder %s36, 0
  %s38 = scalar_select %p37, %s36, 0
  %s39 = smul.addr %s38, 8
  %s40 = scalar_lea.vmem %s2, %s39
  %s41 = sadd.s32 0, 0
  %v42 = vld [vmem:[%s0] sm:$0xff]
  %v43 = vld [vmem:[%s34] sm:$0xff]
  %v44 = vld [vmem:[%s34 + $0x8] sm:$0xff]
  %v45 = vld [vmem:[%s34 + $0x10] sm:$0xff]
  %v46 = vld [vmem:[%s34 + $0x18] sm:$0xff]
  %v47 = vld [vmem:[%s34 + $0x20] sm:$0xff]
  %v48 = vld [vmem:[%s34 + $0x28] sm:$0xff]
  %v49 = vld [vmem:[%s34 + $0x30] sm:$0xff]
  %v50 = vld [vmem:[%s34 + $0x38] sm:$0xff]
  %v51 = vld [vmem:[%s34 + $0x40] sm:$0xff]
  %v52 = vld [vmem:[%s34 + $0x48] sm:$0xff]
  %v53 = vld [vmem:[%s34 + $0x50] sm:$0xff]
  %v54 = vld [vmem:[%s34 + $0x58] sm:$0xff]
  %v55 = vld [vmem:[%s34 + $0x60] sm:$0xff]
  %v56 = vld [vmem:[%s34 + $0x68] sm:$0xf]
  %vm57 = vcmask 883712
  %v59 = vsel %vm57, %v42, 0
  %vm61 = vcmask 1043456
  %v63 = vsel %vm61, %v56, 0
  %65 = vmatprep.subr.mxu0 0.0
  %66 = vmatpush1.msra.mxu0 0.0
  %67 = vmatprep.subr.mxu0 0.0
  %68 = vmatpush1.msra.mxu0 0.0
  %69 = vmatprep.subr.mxu0 0.0
  %70 = vmatpush1.msra.mxu0 %v63
  %71 = vmatprep.subr.mxu0 0.0
  %72 = vmatpush1.msra.mxu0 %v55
  %73 = vmatprep.subr.mxu0 0.0
  %74 = vmatpush1.msra.mxu0 %v54
  %75 = vmatprep.subr.mxu0 0.0
  %76 = vmatpush1.msra.mxu0 %v53
  %77 = vmatprep.subr.mxu0 0.0
  %78 = vmatpush1.msra.mxu0 %v52
  %79 = vmatprep.subr.mxu0 0.0
  %80 = vmatpush1.msra.mxu0 %v51
  %81 = vmatprep.subr.mxu0 0.0
  %82 = vmatpush1.msra.mxu0 %v50
  %83 = vmatprep.subr.mxu0 0.0
  %84 = vmatpush1.msra.mxu0 %v49
  %85 = vmatprep.subr.mxu0 0.0
  %86 = vmatpush1.msra.mxu0 %v48
  %87 = vmatprep.subr.mxu0 0.0
  %88 = vmatpush1.msra.mxu0 %v47
  %89 = vmatprep.subr.mxu0 0.0
  %90 = vmatpush1.msra.mxu0 %v46
  %91 = vmatprep.subr.mxu0 0.0
  %92 = vmatpush1.msra.mxu0 %v45
  %93 = vmatprep.subr.mxu0 0.0
  %94 = vmatpush1.msra.mxu0 %v44
  %95 = vmatprep.subr.mxu0 0.0
  %96 = vmatpush1.msra.mxu0 %v43
  %97 = vmatprep.subr.mxu0 0.0
  %98 = vmatpush2.msra.mxu0 0.0
  %99 = vmatprep.subr.mxu0 0.0
  %100 = vmatpush2.msra.mxu0 0.0
  %101 = vmatprep.subr.mxu0 0.0
  %102 = vmatpush2.msra.mxu0 0.0
  %103 = vmatprep.subr.mxu0 0.0
  %104 = vmatpush2.msra.mxu0 0.0
  %105 = vmatprep.subr.mxu0 0.0
  %106 = vmatpush2.msra.mxu0 0.0
  %107 = vmatprep.subr.mxu0 0.0
  %108 = vmatpush2.msra.mxu0 0.0
  %109 = vmatprep.subr.mxu0 0.0
  %110 = vmatpush2.msra.mxu0 0.0
  %111 = vmatprep.subr.mxu0 0.0
  %112 = vmatpush2.msra.mxu0 0.0
  %113 = vmatprep.subr.mxu0 0.0
  %114 = vmatpush2.msra.mxu0 0.0
  %115 = vmatprep.subr.mxu0 0.0
  %116 = vmatpush2.msra.mxu0 0.0
  %117 = vmatprep.subr.mxu0 0.0
  %118 = vmatpush2.msra.mxu0 0.0
  %119 = vmatprep.subr.mxu0 0.0
  %120 = vmatpush2.msra.mxu0 0.0
  %121 = vmatprep.subr.mxu0 0.0
  %122 = vmatpush2.msra.mxu0 0.0
  %123 = vmatprep.subr.mxu0 0.0
  %124 = vmatpush2.msra.mxu0 0.0
  %125 = vmatprep.subr.mxu0 0.0
  %126 = vmatpush2.msra.mxu0 0.0
  %127 = vmatprep.subr.mxu0 0.0
  %128 = vmatpush2.msra.mxu0 0.0
  %129 = vmatprep.mubr.f32.mxu0 0.0
  %130 = vmatmul.mubr.f32.gmra.mxu0 %v59
  %v131 = vpop.f32.mrf.mxu0
  %v132 = vadd.f32 0.0, %v131
  %v133 = vpop.f32.mrf.mxu0
  %134 = vdwg.mxu0
  %135 = vst [vmem:[%s40] sm:$0xff] %v132
  %p136 = scmp.eq.s32.totalorder 0, 0
  // Predicated region
  $region10: #{down3d_forward.6} parent=0 // pred_check
    %p137 = pneg %p136
  $region11: #{down3d_forward.6} parent=0 // pred_check_branch
    %139 = sbr.rel (%p137) target = $region13
  $region12: #{down3d_forward.6} parent=0 // pred_region
    %vm140 = vcmask 7168
    %141 = vst.msk [vmem:[%s3] sm:$0xff] %vm140, 0.0
    %142 = vst.msk [vmem:[%s4] sm:$0xff] %vm140, 0.0
  $region13: #{down3d_forward.6} parent=0 // pred_fallthru
    _
  %v143 = vld [vmem:[%s3] sm:$0xff]
  %144 = vadd.xlane.f32.xlu0 %v132
  %v145 = vpop.xlane.xlu0 %144
  %v146 = vadd.f32 %v143, %v145
  %vm147 = vcmask 7168
  %148 = vst.msk [vmem:[%s3] sm:$0xff] %vm147, %v146
  %v149 = vld [vmem:[%s4] sm:$0xff]
  %v150 = vmul.f32 %v132, %v132
  %151 = vadd.xlane.f32.xlu0 %v150
  %v152 = vpop.xlane.xlu0 %151
  %v153 = vadd.f32 %v149, %v152
  %154 = vst.msk [vmem:[%s4] sm:$0xff] %vm147, %v153
  %s155 = sadd.s32 0, 0
  %p156 = scmp.lt.s32.totalorder %s155, 0
  %s157 = scalar_select %p156, %s155, 0
  %s158 = smul.addr %s157, 8
  %s159 = scalar_lea.vmem %s2, %s158
  // Predicated region
  $region14: #{down3d_forward.6} parent=0 // pred_check
    _
  $region15: #{down3d_forward.6} parent=0 // pred_check_branch
    %161 = sbr.rel (0) target = $region17
  $region16: #{down3d_forward.6} parent=0 // pred_region
    %s162 = sadd.s32 0, 0
  $region17: #{down3d_forward.6} parent=0 // pred_fallthru
    _
  // Predicated region
  $region18: #{down3d_forward.6} parent=0 // pred_check
    _
  $region19: #{down3d_forward.6} parent=0 // pred_check_branch
    %164 = sbr.rel (0) target = $region21
  $region20: #{down3d_forward.6} parent=0 // pred_region
    _
  $region21: #{down3d_forward.6} parent=0 // pred_fallthru
    _
  // Predicated region
  $region22: #{down3d_forward.6} parent=0 // pred_check
    _
  $region23: #{down3d_forward.6} parent=0 // pred_check_branch
    %166 = sbr.rel (0) target = $region25
  $region24: #{down3d_forward.6} parent=0 // pred_region
    _
  $region25: #{down3d_forward.6} parent=0 // pred_fallthru
    _
  // Predicated region
  $region26: #{down3d_forward.6} parent=0 // pred_check
    _
  $region27: #{down3d_forward.6} parent=0 // pred_check_branch
    %168 = sbr.rel (0) target = $region29
  $region28: #{down3d_forward.6} parent=0 // pred_region
    %s169 = sadd.s32 0, 0
    %p170 = scmp.lt.s32.totalorder %s169, 0
    %s171 = scalar_select %p170, %s169, 0
    %s172 = smul.addr %s171, 8
    %s173 = scalar_lea.vmem %s2, %s172
  $region29: #{down3d_forward.6} parent=0 // pred_fallthru
    _
  // Predicated region
  $region30: #{down3d_forward.6} parent=0 // pred_check
    _
  $region31: #{down3d_forward.6} parent=0 // pred_check_branch
    %175 = sbr.rel (0) target = $region33
  $region32: #{down3d_forward.6} parent=0 // pred_region
    _
  $region33: #{down3d_forward.6} parent=0 // pred_fallthru
    _
  // Predicated region
  $region34: #{down3d_forward.6} parent=0 // pred_check
    _
  $region35: #{down3d_forward.6} parent=0 // pred_check_branch
    %177 = sbr.rel (0) target = $region37
  $region36: #{down3d_forward.6} parent=0 // pred_region
    _
  $region37: #{down3d_forward.6} parent=0 // pred_fallthru
    _

// kernel: down3d_forward.7
$region0: #{down3d_forward.7}
  #allocation0 [shape = 'u32[]', space=smem, size = 0x4, offset = 0x4, fixed_abs, tag = 'smem constant byte address 0x4 - core index']
  #allocation1 [shape = 'u32[144,128]{1,0:T(1,128)}', space=vmem, size = 0x12000, scoped, tag = 'internal scratch']
  %s0 = inlined_call_operand.vmem [shape: f32[8,1], index: 0, kind: input, shape index: {}]
  %s1 = inlined_call_operand.vmem [shape: f32[8,1], index: 1, kind: input, shape index: {}]
  %s2 = inlined_call_operand.vmem [shape: f32[8,128], index: 2, kind: input, shape index: {}]
  %s3 = inlined_call_operand.vmem [shape: f32[8,128], index: 3, kind: output, shape index: {}]
  %s4 = sld [smem:[#allocation0]]
  $region22: #{down3d_forward.7} parent=0
    _
  %s6 = ssub.s32 1, %s4
  %s7 = scalar_select 0, %s6, %s4
  // Predicated region
  $region2: #{down3d_forward.7} parent=0 // pred_check
    _
  $region3: #{down3d_forward.7} parent=0 // pred_check_branch
    %9 = sbr.rel (0) target = $region5
  $region4: #{down3d_forward.7} parent=0 // pred_region
    _
  $region5: #{down3d_forward.7} parent=0 // pred_fallthru
    _
  // Predicated region
  $region6: #{down3d_forward.7} parent=0 // pred_check
    _
  $region7: #{down3d_forward.7} parent=0 // pred_check_branch
    %11 = sbr.rel (0) target = $region9
  $region8: #{down3d_forward.7} parent=0 // pred_region
    _
  $region9: #{down3d_forward.7} parent=0 // pred_fallthru
    _
  // Predicated region
  $region10: #{down3d_forward.7} parent=0 // pred_check
    _
  $region11: #{down3d_forward.7} parent=0 // pred_check_branch
    %13 = sbr.rel (0) target = $region13
  $region12: #{down3d_forward.7} parent=0 // pred_region
    _
  $region13: #{down3d_forward.7} parent=0 // pred_fallthru
    _
  %v14 = vld [vmem:[%s2] sm:$0xff]
  %v15 = vld [vmem:[%s0] sm:$0xff]
  %17 = vset.pattern.permute.xlu0 0
  %18 = vperm.xlu0 %17, %v15
  %v19 = vpop.permute.xlu0 %18
  %v21 = vmul.f32 %v14, %v19
  %v22 = vld [vmem:[%s1] sm:$0xff]
  %24 = vset.pattern.permute.xlu0 0
  %25 = vperm.xlu0 %24, %v22
  %v26 = vpop.permute.xlu0 %25
  %v28 = vadd.f32 %v21, %v26
  %v29 = vmax.f32 %v28, 0.0
  %30 = vst [vmem:[%s3] sm:$0xff] %v29
  // Predicated region
  $region14: #{down3d_forward.7} parent=0 // pred_check
    _
  $region15: #{down3d_forward.7} parent=0 // pred_check_branch
    %32 = sbr.rel (0) target = $region17
  $region16: #{down3d_forward.7} parent=0 // pred_region
    _
  $region17: #{down3d_forward.7} parent=0 // pred_fallthru
    _
  // Predicated region
  $region18: #{down3d_forward.7} parent=0 // pred_check
    _
  $region19: #{down3d_forward.7} parent=0 // pred_check_branch
    %34 = sbr.rel (0) target = $region21
  $region20: #{down3d_forward.7} parent=0 // pred_region
    _
  $region21: #{down3d_forward.7} parent=0 // pred_fallthru
    _

// kernel: down3d_forward.8
$region0: #{down3d_forward.8}
  #allocation0 [shape = 'u32[]', space=smem, size = 0x4, offset = 0x4, fixed_abs, tag = 'smem constant byte address 0x4 - core index']
  #allocation1 [shape = 'u32[144,128]{1,0:T(1,128)}', space=vmem, size = 0x12000, scoped, tag = 'internal scratch']
  %s0 = inlined_call_operand.vmem [shape: f32[8,216], index: 0, kind: input, shape index: {}]
  %s1 = inlined_call_operand.vmem [shape: f32[216,128], index: 1, kind: input, shape index: {}]
  %s2 = inlined_call_operand.vmem [shape: f32[8,128], index: 2, kind: output, shape index: {0}]
  %s3 = inlined_call_operand.vmem [shape: f32[1,8,1], index: 3, kind: output, shape index: {1}]
  %s4 = inlined_call_operand.vmem [shape: f32[1,8,1], index: 4, kind: output, shape index: {2}]
  %5 = xla_tuple %s2, %s3, %s4
  %s6 = sld [smem:[#allocation0]]
  $region38: #{down3d_forward.8} parent=0
    _
  %s8 = ssub.s32 1, %s6
  %s9 = scalar_select 0, %s8, %s6
  // Predicated region
  $region2: #{down3d_forward.8} parent=0 // pred_check
    _
  $region3: #{down3d_forward.8} parent=0 // pred_check_branch
    %11 = sbr.rel (0) target = $region5
  $region4: #{down3d_forward.8} parent=0 // pred_region
    _
  $region5: #{down3d_forward.8} parent=0 // pred_fallthru
    _
  // Predicated region
  $region6: #{down3d_forward.8} parent=0 // pred_check
    _
  $region7: #{down3d_forward.8} parent=0 // pred_check_branch
    %13 = sbr.rel (0) target = $region9
  $region8: #{down3d_forward.8} parent=0 // pred_region
    %s14 = sadd.s32 0, 0
    %p15 = scmp.lt.s32.totalorder %s14, 0
    %s16 = scalar_select %p15, %s14, 0
    %s17 = smul.addr %s16, 8
    %s18 = scalar_lea.vmem %s1, %s17
    %s19 = sadd.s32 0, 0
  $region9: #{down3d_forward.8} parent=0 // pred_fallthru
    _
  %s20 = sadd.s32 0, 0
  %p21 = scmp.lt.s32.totalorder %s20, 0
  %s22 = scalar_select %p21, %s20, 0
  %s23 = smul.addr %s22, 8
  %s24 = scalar_lea.vmem %s1, %s23
  %s25 = sadd.s32 0, 0
  %p26 = scmp.lt.s32.totalorder %s25, 0
  %s27 = scalar_select %p26, %s25, 0
  %s28 = smul.addr %s27, 8
  %s29 = scalar_lea.vmem %s2, %s28
  %s30 = sadd.s32 0, 0
  %p31 = scmp.lt.s32.totalorder %s30, 0
  %s32 = scalar_select %p31, %s30, 0
  %s33 = smul.addr %s32, 8
  %s34 = scalar_lea.vmem %s1, %s33
  %s35 = sadd.s32 0, 0
  %s36 = sadd.s32 0, 0
  %p37 = scmp.lt.s32.totalorder %s36, 0
  %s38 = scalar_select %p37, %s36, 0
  %s39 = smul.addr %s38, 8
  %s40 = scalar_lea.vmem %s2, %s39
  %s41 = sadd.s32 0, 0
  %v42 = vld [vmem:[%s0] sm:$0xff]
  %v43 = vld [vmem:[%s0 + $0x8] sm:$0xff]
  %v44 = vld [vmem:[%s34] sm:$0xff]
  %v45 = vld [vmem:[%s34 + $0x8] sm:$0xff]
  %v46 = vld [vmem:[%s34 + $0x10] sm:$0xff]
  %v47 = vld [vmem:[%s34 + $0x18] sm:$0xff]
  %v48 = vld [vmem:[%s34 + $0x20] sm:$0xff]
  %v49 = vld [vmem:[%s34 + $0x28] sm:$0xff]
  %v50 = vld [vmem:[%s34 + $0x30] sm:$0xff]
  %v51 = vld [vmem:[%s34 + $0x38] sm:$0xff]
  %v52 = vld [vmem:[%s34 + $0x40] sm:$0xff]
  %v53 = vld [vmem:[%s34 + $0x48] sm:$0xff]
  %v54 = vld [vmem:[%s34 + $0x50] sm:$0xff]
  %v55 = vld [vmem:[%s34 + $0x58] sm:$0xff]
  %v56 = vld [vmem:[%s34 + $0x60] sm:$0xff]
  %v57 = vld [vmem:[%s34 + $0x68] sm:$0xff]
  %v58 = vld [vmem:[%s34 + $0x70] sm:$0xff]
  %v59 = vld [vmem:[%s34 + $0x78] sm:$0xff]
  %v60 = vld [vmem:[%s34 + $0x80] sm:$0xff]
  %v61 = vld [vmem:[%s34 + $0x88] sm:$0xff]
  %v62 = vld [vmem:[%s34 + $0x90] sm:$0xff]
  %v63 = vld [vmem:[%s34 + $0x98] sm:$0xff]
  %v64 = vld [vmem:[%s34 + $0xa0] sm:$0xff]
  %v65 = vld [vmem:[%s34 + $0xa8] sm:$0xff]
  %v66 = vld [vmem:[%s34 + $0xb0] sm:$0xff]
  %v67 = vld [vmem:[%s34 + $0xb8] sm:$0xff]
  %v68 = vld [vmem:[%s34 + $0xc0] sm:$0xff]
  %v69 = vld [vmem:[%s34 + $0xc8] sm:$0xff]
  %v70 = vld [vmem:[%s34 + $0xd0] sm:$0xff]
  %vm71 = vcmask 719872
  %v73 = vsel %vm71, %v43, 0
  %75 = vmatprep.subr.mxu0 0.0
  %76 = vmatpush1.msra.mxu0 %v59
  %77 = vmatprep.subr.mxu0 0.0
  %78 = vmatpush1.msra.mxu0 %v58
  %79 = vmatprep.subr.mxu0 0.0
  %80 = vmatpush1.msra.mxu0 %v57
  %81 = vmatprep.subr.mxu0 0.0
  %82 = vmatpush1.msra.mxu0 %v56
  %83 = vmatprep.subr.mxu0 0.0
  %84 = vmatpush1.msra.mxu0 %v55
  %85 = vmatprep.subr.mxu0 0.0
  %86 = vmatpush1.msra.mxu0 %v54
  %87 = vmatprep.subr.mxu0 0.0
  %88 = vmatpush1.msra.mxu0 %v53
  %89 = vmatprep.subr.mxu0 0.0
  %90 = vmatpush1.msra.mxu0 %v52
  %91 = vmatprep.subr.mxu0 0.0
  %92 = vmatpush1.msra.mxu0 %v51
  %93 = vmatprep.subr.mxu0 0.0
  %94 = vmatpush1.msra.mxu0 %v50
  %95 = vmatprep.subr.mxu0 0.0
  %96 = vmatpush1.msra.mxu0 %v49
  %97 = vmatprep.subr.mxu0 0.0
  %98 = vmatpush1.msra.mxu0 %v48
  %99 = vmatprep.subr.mxu0 0.0
  %100 = vmatpush1.msra.mxu0 %v47
  %101 = vmatprep.subr.mxu0 0.0
  %102 = vmatpush1.msra.mxu0 %v46
  %103 = vmatprep.subr.mxu0 0.0
  %104 = vmatpush1.msra.mxu0 %v45
  %105 = vmatprep.subr.mxu0 0.0
  %106 = vmatpush1.msra.mxu0 %v44
  %107 = vmatprep.subr.mxu0 0.0
  %108 = vmatpush2.msra.mxu0 0.0
  %109 = vmatprep.subr.mxu0 0.0
  %110 = vmatpush2.msra.mxu0 0.0
  %111 = vmatprep.subr.mxu0 0.0
  %112 = vmatpush2.msra.mxu0 0.0
  %113 = vmatprep.subr.mxu0 0.0
  %114 = vmatpush2.msra.mxu0 0.0
  %115 = vmatprep.subr.mxu0 0.0
  %116 = vmatpush2.msra.mxu0 0.0
  %117 = vmatprep.subr.mxu0 0.0
  %118 = vmatpush2.msra.mxu0 %v70
  %119 = vmatprep.subr.mxu0 0.0
  %120 = vmatpush2.msra.mxu0 %v69
  %121 = vmatprep.subr.mxu0 0.0
  %122 = vmatpush2.msra.mxu0 %v68
  %123 = vmatprep.subr.mxu0 0.0
  %124 = vmatpush2.msra.mxu0 %v67
  %125 = vmatprep.subr.mxu0 0.0
  %126 = vmatpush2.msra.mxu0 %v66
  %127 = vmatprep.subr.mxu0 0.0
  %128 = vmatpush2.msra.mxu0 %v65
  %129 = vmatprep.subr.mxu0 0.0
  %130 = vmatpush2.msra.mxu0 %v64
  %131 = vmatprep.subr.mxu0 0.0
  %132 = vmatpush2.msra.mxu0 %v63
  %133 = vmatprep.subr.mxu0 0.0
  %134 = vmatpush2.msra.mxu0 %v62
  %135 = vmatprep.subr.mxu0 0.0
  %136 = vmatpush2.msra.mxu0 %v61
  %137 = vmatprep.subr.mxu0 0.0
  %138 = vmatpush2.msra.mxu0 %v60
  %139 = vmatprep.mubr.f32.mxu0 %v73
  %140 = vmatmul.mubr.f32.gmra.mxu0 %v42
  %v141 = vpop.f32.mrf.mxu0
  %v142 = vadd.f32 0.0, %v141
  %v143 = vpop.f32.mrf.mxu0
  %144 = vdwg.mxu0
  %145 = vst [vmem:[%s40] sm:$0xff] %v142
  %p146 = scmp.eq.s32.totalorder 0, 0
  // Predicated region
  $region10: #{down3d_forward.8} parent=0 // pred_check
    %p147 = pneg %p146
  $region11: #{down3d_forward.8} parent=0 // pred_check_branch
    %149 = sbr.rel (%p147) target = $region13
  $region12: #{down3d_forward.8} parent=0 // pred_region
    %vm150 = vcmask 7168
    %151 = vst.msk [vmem:[%s3] sm:$0xff] %vm150, 0.0
    %152 = vst.msk [vmem:[%s4] sm:$0xff] %vm150, 0.0
  $region13: #{down3d_forward.8} parent=0 // pred_fallthru
    _
  %v153 = vld [vmem:[%s3] sm:$0xff]
  %154 = vadd.xlane.f32.xlu0 %v142
  %v155 = vpop.xlane.xlu0 %154
  %v156 = vadd.f32 %v153, %v155
  %vm157 = vcmask 7168
  %158 = vst.msk [vmem:[%s3] sm:$0xff] %vm157, %v156
  %v159 = vld [vmem:[%s4] sm:$0xff]
  %v160 = vmul.f32 %v142, %v142
  %161 = vadd.xlane.f32.xlu0 %v160
  %v162 = vpop.xlane.xlu0 %161
  %v163 = vadd.f32 %v159, %v162
  %164 = vst.msk [vmem:[%s4] sm:$0xff] %vm157, %v163
  %s165 = sadd.s32 0, 0
  %p166 = scmp.lt.s32.totalorder %s165, 0
  %s167 = scalar_select %p166, %s165, 0
  %s168 = smul.addr %s167, 8
  %s169 = scalar_lea.vmem %s2, %s168
  // Predicated region
  $region14: #{down3d_forward.8} parent=0 // pred_check
    _
  $region15: #{down3d_forward.8} parent=0 // pred_check_branch
    %171 = sbr.rel (0) target = $region17
  $region16: #{down3d_forward.8} parent=0 // pred_region
    %s172 = sadd.s32 0, 0
  $region17: #{down3d_forward.8} parent=0 // pred_fallthru
    _
  // Predicated region
  $region18: #{down3d_forward.8} parent=0 // pred_check
    _
  $region19: #{down3d_forward.8} parent=0 // pred_check_branch
    %174 = sbr.rel (0) target = $region21
  $region20: #{down3d_forward.8} parent=0 // pred_region
    _
  $region21: #{down3d_forward.8} parent=0 // pred_fallthru
    _
  // Predicated region
  $region22: #{down3d_forward.8} parent=0 // pred_check
    _
  $region23: #{down3d_forward.8} parent=0 // pred_check_branch
    %176 = sbr.rel (0) target = $region25
  $region24: #{down3d_forward.8} parent=0 // pred_region
    _
  $region25: #{down3d_forward.8} parent=0 // pred_fallthru
    _
  // Predicated region
  $region26: #{down3d_forward.8} parent=0 // pred_check
    _
  $region27: #{down3d_forward.8} parent=0 // pred_check_branch
    %178 = sbr.rel (0) target = $region29
  $region28: #{down3d_forward.8} parent=0 // pred_region
    %s179 = sadd.s32 0, 0
    %p180 = scmp.lt.s32.totalorder %s179, 0
    %s181 = scalar_select %p180, %s179, 0
    %s182 = smul.addr %s181, 8
    %s183 = scalar_lea.vmem %s2, %s182
  $region29: #{down3d_forward.8} parent=0 // pred_fallthru
    _
  // Predicated region
  $region30: #{down3d_forward.8} parent=0 // pred_check
    _
  $region31: #{down3d_forward.8} parent=0 // pred_check_branch
    %185 = sbr.rel (0) target = $region33
  $region32: #{down3d_forward.8} parent=0 // pred_region
    _
  $region33: #{down3d_forward.8} parent=0 // pred_fallthru
    _
  // Predicated region
  $region34: #{down3d_forward.8} parent=0 // pred_check
    _
  $region35: #{down3d_forward.8} parent=0 // pred_check_branch
    %187 = sbr.rel (0) target = $region37
  $region36: #{down3d_forward.8} parent=0 // pred_region
    _
  $region37: #{down3d_forward.8} parent=0 // pred_fallthru
    _

</llo_original>
